<compile_context>
chip_gen: v5e
topology: v5e:2x2
jax: 0.10.0
libtpu: 0.0.40
codegen_flags: <defaults>
</compile_context>

<pallas_src>
import jax
import jax.numpy as jnp
from jax.experimental import pallas as pl
from jax.experimental.pallas import tpu as pltpu

NEG_SLOPE = 0.01  # F.leaky_relu default negative_slope
LANE = 128        # TPU lane width; all layer widths here are <= 128


def _leaky_relu(v):
    return jnp.where(v > 0, v, NEG_SLOPE * v)


def _round_up(n, m):
    return ((n + m - 1) // m) * m


def dqn2_kernel(x_ref, w_ref, b_ref, out_ref):
    # x_ref:   (TM, 128)      f32  (zero-padded features)
    # w_ref:   (4, 128, 128)  bf16 (zero-padded weight slab, layer-major)
    # b_ref:   (4, 1, 128)    f32  (zero-padded bias slab)
    # out_ref: (TM, 128)      f32  (lane-dense; real cols sliced in wrapper)
    h = x_ref[...].astype(jnp.bfloat16)
    for layer in range(3):
        a = jnp.dot(h, w_ref[layer], preferred_element_type=jnp.float32)
        a = _leaky_relu(a + b_ref[layer])
        # dropout (p=0.0538) -> identity in eval mode
        h = a.astype(jnp.bfloat16)
    out = jnp.dot(h, w_ref[3], preferred_element_type=jnp.float32) + b_ref[3]
    out_ref[...] = out


def pack_params(params, state_dim, action_size):
    """Zero-pad all four layers into one (4,128,128) bf16 weight slab and one
    (4,1,128) f32 bias slab. Zero padding contributes nothing to the result."""
    dims = [(state_dim, 64), (64, 128), (128, 64), (64, action_size)]
    w_slab = jnp.zeros((4, LANE, LANE), jnp.float32)
    b_slab = jnp.zeros((4, 1, LANE), jnp.float32)
    for i, (fan_in, fan_out) in enumerate(dims):
        w_slab = w_slab.at[i, :fan_in, :fan_out].set(params[f"w{i+1}"])
        b_slab = b_slab.at[i, 0, :fan_out].set(params[f"b{i+1}"].reshape(-1))
    return w_slab.astype(jnp.bfloat16), b_slab


def dqn2_forward(x, params, *, block_rows=256):
    """x: (B, state_dim) float32. params: dict of w1..w4 (in,out) and b1..b4."""
    B, state_dim = x.shape
    action_size = params["w4"].shape[1]

    w_slab, b_slab = pack_params(params, state_dim, action_size)

    # Batch tile: multiple of 8 sublanes; cap so small B doesn't over-pad.
    tm = min(block_rows, _round_up(B, 8))
    b_pad = _round_up(B, tm)

    # Zero-pad batch rows to a multiple of tm and features to the lane width.
    x_pad = jnp.zeros((b_pad, LANE), jnp.float32).at[:B, :state_dim].set(x)

    # Explicit per-argument specs (no late-binding lambdas).
    in_specs = [
        pl.BlockSpec((tm, LANE), lambda i: (i, 0)),          # x: tiled over batch
        pl.BlockSpec((4, LANE, LANE), lambda i: (0, 0, 0)),  # weights: resident
        pl.BlockSpec((4, 1, LANE), lambda i: (0, 0, 0)),     # biases: resident
    ]
    out_spec = pl.BlockSpec((tm, LANE), lambda i: (i, 0))

    out_pad = pl.pallas_call(
        dqn2_kernel,
        out_shape=jax.ShapeDtypeStruct((b_pad, LANE), jnp.float32),
        grid=(b_pad // tm,),
        in_specs=in_specs,
        out_specs=out_spec,
        compiler_params=pltpu.CompilerParams(
            dimension_semantics=("parallel",)),  # both TCs on v7x; no-op on v5e/v6e
    )(x_pad, w_slab, b_slab)

    return out_pad[:B, :action_size]


def dqn2_reference(x, params):
    """Pure-JAX reference with the same bf16-input / f32-accumulate numerics."""
    h = x
    for i in range(1, 4):
        z = jnp.dot(h.astype(jnp.bfloat16), params[f"w{i}"].astype(jnp.bfloat16),
                    preferred_element_type=jnp.float32) + params[f"b{i}"]
        h = _leaky_relu(z)
    return jnp.dot(h.astype(jnp.bfloat16), params["w4"].astype(jnp.bfloat16),
                   preferred_element_type=jnp.float32) + params["b4"]


def init_params(key, state_dim, action_size):
    """Deterministic init mimicking nn.Linear's uniform(-1/sqrt(fan_in), ...).
    Weights stored as (in_features, out_features)."""
    dims = [(state_dim, 64), (64, 128), (128, 64), (64, action_size)]
    params = {}
    for i, (fan_in, fan_out) in enumerate(dims, start=1):
        key, kw, kb = jax.random.split(key, 3)
        bound = 1.0 / jnp.sqrt(jnp.float32(fan_in))
        params[f"w{i}"] = jax.random.uniform(
            kw, (fan_in, fan_out), jnp.float32, -bound, bound)
        params[f"b{i}"] = jax.random.uniform(
            kb, (1, fan_out), jnp.float32, -bound, bound)
    return params


if __name__ == "__main__":
    key = jax.random.PRNGKey(0)
    B, state_dim, action_size = 8, 16, 4

    key, kx, kp = jax.random.split(key, 3)
    x = jax.random.normal(kx, (B, state_dim), jnp.float32)
    params = init_params(kp, state_dim, action_size)

    out = dqn2_forward(x, params)
    jax.block_until_ready(out)

    assert out.shape == (B, action_size)
    assert out.dtype == jnp.float32

    ref = dqn2_reference(x, params)
    assert jnp.all(jnp.isfinite(out))
    assert jnp.allclose(out, ref, atol=5e-3, rtol=5e-3), (
        f"max abs err {jnp.max(jnp.abs(out - ref))}")

    print("KERNEL_OK")
</pallas_src>

<mosaic_0001>
module attributes {stable_mosaic.version = 11 : i64} {
  func.func @dqn2_kernel(%arg0: i32, %arg1: memref<8x128xf32, #tpu.memory_space<vmem>>, %arg2: memref<4x128x128xbf16, #tpu.memory_space<vmem>>, %arg3: memref<4x1x128xf32, #tpu.memory_space<vmem>>, %arg4: memref<8x128xf32, #tpu.memory_space<vmem>>) attributes {dimension_semantics = [#tpu.dimension_semantics<parallel>], iteration_bounds = array<i64: 1>, scalar_prefetch = 0 : i64, scratch_operands = 0 : i64, tpu.core_type = #tpu.core_type<tc>, window_params = [{transform_indices = @transform_0, window_bounds = array<i64: 8, 128>}, {pipeline_mode = #tpu.pipeline_mode<synchronous>, transform_indices = @transform_1, window_bounds = array<i64: 4, 128, 128>}, {pipeline_mode = #tpu.pipeline_mode<synchronous>, transform_indices = @transform_2, window_bounds = array<i64: 4, 1, 128>}, {transform_indices = @transform_3, window_bounds = array<i64: 8, 128>}]} {
    %c0 = arith.constant 0 : index
    %c0_0 = arith.constant 0 : index
    %0 = vector.load %arg1[%c0, %c0_0] : memref<8x128xf32, #tpu.memory_space<vmem>>, vector<8x128xf32>
    %1 = arith.truncf %0 : vector<8x128xf32> to vector<8x128xbf16>
    %c0_1 = arith.constant 0 : index
    %c0_2 = arith.constant 0 : index
    %c0_3 = arith.constant 0 : index
    %2 = vector.load %arg2[%c0_1, %c0_2, %c0_3] : memref<4x128x128xbf16, #tpu.memory_space<vmem>>, vector<1x128x128xbf16>
    %3 = vector.shape_cast %2 : vector<1x128x128xbf16> to vector<128x128xbf16>
    %cst = arith.constant dense<0.000000e+00> : vector<8x128xf32>
    %4 = tpu.matmul %1, %3, %cst {dimension_numbers = #tpu.dot_dimension_numbers<[1], [0], [0], [1], [0, 0, 1, 1], [], []>} : vector<8x128xbf16>, vector<128x128xbf16>, vector<8x128xf32> -> vector<8x128xf32>
    %c0_4 = arith.constant 0 : index
    %c0_5 = arith.constant 0 : index
    %c0_6 = arith.constant 0 : index
    %5 = vector.load %arg3[%c0_4, %c0_5, %c0_6] : memref<4x1x128xf32, #tpu.memory_space<vmem>>, vector<1x1x128xf32>
    %6 = vector.shape_cast %5 : vector<1x1x128xf32> to vector<1x128xf32>
    %7 = vector.broadcast %6 : vector<1x128xf32> to vector<8x128xf32>
    %8 = arith.addf %4, %7 : vector<8x128xf32>
    %cst_7 = arith.constant 0.000000e+00 : f32
    %9 = vector.broadcast %cst_7 : f32 to vector<8x128xf32>
    %10 = arith.cmpf ogt, %8, %9 : vector<8x128xf32>
    %cst_8 = arith.constant 0.00999999977 : f32
    %11 = vector.broadcast %cst_8 : f32 to vector<8x128xf32>
    %12 = arith.mulf %11, %8 : vector<8x128xf32>
    %13 = arith.select %10, %8, %12 : vector<8x128xi1>, vector<8x128xf32>
    %14 = arith.truncf %13 : vector<8x128xf32> to vector<8x128xbf16>
    %c1 = arith.constant 1 : index
    %c0_9 = arith.constant 0 : index
    %c0_10 = arith.constant 0 : index
    %15 = vector.load %arg2[%c1, %c0_9, %c0_10] : memref<4x128x128xbf16, #tpu.memory_space<vmem>>, vector<1x128x128xbf16>
    %16 = vector.shape_cast %15 : vector<1x128x128xbf16> to vector<128x128xbf16>
    %cst_11 = arith.constant dense<0.000000e+00> : vector<8x128xf32>
    %17 = tpu.matmul %14, %16, %cst_11 {dimension_numbers = #tpu.dot_dimension_numbers<[1], [0], [0], [1], [0, 0, 1, 1], [], []>} : vector<8x128xbf16>, vector<128x128xbf16>, vector<8x128xf32> -> vector<8x128xf32>
    %c1_12 = arith.constant 1 : index
    %c0_13 = arith.constant 0 : index
    %c0_14 = arith.constant 0 : index
    %18 = vector.load %arg3[%c1_12, %c0_13, %c0_14] : memref<4x1x128xf32, #tpu.memory_space<vmem>>, vector<1x1x128xf32>
    %19 = vector.shape_cast %18 : vector<1x1x128xf32> to vector<1x128xf32>
    %20 = vector.broadcast %19 : vector<1x128xf32> to vector<8x128xf32>
    %21 = arith.addf %17, %20 : vector<8x128xf32>
    %cst_15 = arith.constant 0.000000e+00 : f32
    %22 = vector.broadcast %cst_15 : f32 to vector<8x128xf32>
    %23 = arith.cmpf ogt, %21, %22 : vector<8x128xf32>
    %cst_16 = arith.constant 0.00999999977 : f32
    %24 = vector.broadcast %cst_16 : f32 to vector<8x128xf32>
    %25 = arith.mulf %24, %21 : vector<8x128xf32>
    %26 = arith.select %23, %21, %25 : vector<8x128xi1>, vector<8x128xf32>
    %27 = arith.truncf %26 : vector<8x128xf32> to vector<8x128xbf16>
    %c2 = arith.constant 2 : index
    %c0_17 = arith.constant 0 : index
    %c0_18 = arith.constant 0 : index
    %28 = vector.load %arg2[%c2, %c0_17, %c0_18] : memref<4x128x128xbf16, #tpu.memory_space<vmem>>, vector<1x128x128xbf16>
    %29 = vector.shape_cast %28 : vector<1x128x128xbf16> to vector<128x128xbf16>
    %cst_19 = arith.constant dense<0.000000e+00> : vector<8x128xf32>
    %30 = tpu.matmul %27, %29, %cst_19 {dimension_numbers = #tpu.dot_dimension_numbers<[1], [0], [0], [1], [0, 0, 1, 1], [], []>} : vector<8x128xbf16>, vector<128x128xbf16>, vector<8x128xf32> -> vector<8x128xf32>
    %c2_20 = arith.constant 2 : index
    %c0_21 = arith.constant 0 : index
    %c0_22 = arith.constant 0 : index
    %31 = vector.load %arg3[%c2_20, %c0_21, %c0_22] : memref<4x1x128xf32, #tpu.memory_space<vmem>>, vector<1x1x128xf32>
    %32 = vector.shape_cast %31 : vector<1x1x128xf32> to vector<1x128xf32>
    %33 = vector.broadcast %32 : vector<1x128xf32> to vector<8x128xf32>
    %34 = arith.addf %30, %33 : vector<8x128xf32>
    %cst_23 = arith.constant 0.000000e+00 : f32
    %35 = vector.broadcast %cst_23 : f32 to vector<8x128xf32>
    %36 = arith.cmpf ogt, %34, %35 : vector<8x128xf32>
    %cst_24 = arith.constant 0.00999999977 : f32
    %37 = vector.broadcast %cst_24 : f32 to vector<8x128xf32>
    %38 = arith.mulf %37, %34 : vector<8x128xf32>
    %39 = arith.select %36, %34, %38 : vector<8x128xi1>, vector<8x128xf32>
    %40 = arith.truncf %39 : vector<8x128xf32> to vector<8x128xbf16>
    %c3 = arith.constant 3 : index
    %c0_25 = arith.constant 0 : index
    %c0_26 = arith.constant 0 : index
    %41 = vector.load %arg2[%c3, %c0_25, %c0_26] : memref<4x128x128xbf16, #tpu.memory_space<vmem>>, vector<1x128x128xbf16>
    %42 = vector.shape_cast %41 : vector<1x128x128xbf16> to vector<128x128xbf16>
    %cst_27 = arith.constant dense<0.000000e+00> : vector<8x128xf32>
    %43 = tpu.matmul %40, %42, %cst_27 {dimension_numbers = #tpu.dot_dimension_numbers<[1], [0], [0], [1], [0, 0, 1, 1], [], []>} : vector<8x128xbf16>, vector<128x128xbf16>, vector<8x128xf32> -> vector<8x128xf32>
    %c3_28 = arith.constant 3 : index
    %c0_29 = arith.constant 0 : index
    %c0_30 = arith.constant 0 : index
    %44 = vector.load %arg3[%c3_28, %c0_29, %c0_30] : memref<4x1x128xf32, #tpu.memory_space<vmem>>, vector<1x1x128xf32>
    %45 = vector.shape_cast %44 : vector<1x1x128xf32> to vector<1x128xf32>
    %46 = vector.broadcast %45 : vector<1x128xf32> to vector<8x128xf32>
    %47 = arith.addf %43, %46 : vector<8x128xf32>
    %c0_31 = arith.constant 0 : index
    %c0_32 = arith.constant 0 : index
    %48 = vector.load %arg4[%c0_31, %c0_32] : memref<8x128xf32, #tpu.memory_space<vmem>>, vector<8x128xf32>
    tpu.vector_store %arg4[%c0_31, %c0_32], %47 {strides = array<i32>} : memref<8x128xf32, #tpu.memory_space<vmem>>, vector<8x128xf32>,
    return
  }
  func.func @transform_0(%arg0: i32) -> (i32, i32) {
    %c0_i32 = arith.constant 0 : i32
    %c0_i32_0 = arith.constant 0 : i32
    return %arg0, %c0_i32 : i32, i32
  }
  func.func @transform_1(%arg0: i32) -> (i32, i32, i32) {
    %c0_i32 = arith.constant 0 : i32
    %c0_i32_0 = arith.constant 0 : i32
    %c0_i32_1 = arith.constant 0 : i32
    %c0_i32_2 = arith.constant 0 : i32
    return %c0_i32, %c0_i32_0, %c0_i32_1 : i32, i32, i32
  }
  func.func @transform_2(%arg0: i32) -> (i32, i32, i32) {
    %c0_i32 = arith.constant 0 : i32
    %c0_i32_0 = arith.constant 0 : i32
    %c0_i32_1 = arith.constant 0 : i32
    %c0_i32_2 = arith.constant 0 : i32
    return %c0_i32, %c0_i32_0, %c0_i32_1 : i32, i32, i32
  }
  func.func @transform_3(%arg0: i32) -> (i32, i32) {
    %c0_i32 = arith.constant 0 : i32
    %c0_i32_0 = arith.constant 0 : i32
    return %arg0, %c0_i32 : i32, i32
  }
}

</mosaic_0001>

<llo_original>
// kernel: tpu_custom_call.1
$region0: #{tpu_custom_call.1}
  #allocation0 [shape = 'u32[]', space=smem, size = 0x4, offset = 0x4, fixed_abs, tag = 'smem constant byte address 0x4 - core index']
  #allocation1 [shape = 'u32[72,128]{1,0:T(1,128)}', space=vmem, size = 0x9000, scoped, tag = 'internal scratch']
  %s0 = inlined_call_operand.hbm [shape: f32[8,128], index: 0, kind: input, shape index: {}]
  %s1 = inlined_call_operand.hbm [shape: bf16[4,128,128], index: 1, kind: input, shape index: {}]
  %s2 = inlined_call_operand.hbm [shape: f32[4,1,128], index: 2, kind: input, shape index: {}]
  %s3 = inlined_call_operand.hbm [shape: f32[8,128], index: 3, kind: output, shape index: {}]
  %s4 = sld [smem:[#allocation0]]
  $region34: #{tpu_custom_call.1} parent=0
    _
  %s6 = ssub.s32 1, %s4
  %s7 = scalar_select 0, %s6, %s4
  $region1: #{tpu_custom_call.1} parent=0
    #allocation2 [shape = 'u8[4096]{0}', space=vmem, size = 0x1000, scoped, tag = 'input window, operand 0, single buffered']
    #allocation3 [shape = 's32[1]{0}', space=sflag, size = 0x4, scoped, tag = 'scoped memory for tpu_custom_call.1']
    #allocation4 [shape = 's32[1]{0}', space=sflag, size = 0x4, scoped, tag = 'scoped memory for tpu_custom_call.1']
    #allocation5 [shape = 'u8[131072]{0}', space=vmem, size = 0x20000, scoped, tag = 'input window, operand 1, single buffered']
    #allocation6 [shape = 's32[1]{0}', space=sflag, size = 0x4, scoped, tag = 'scoped memory for tpu_custom_call.1']
    #allocation7 [shape = 'u8[2048]{0}', space=vmem, size = 0x800, scoped, tag = 'input window, operand 2, single buffered']
    #allocation8 [shape = 'u8[4096]{0}', space=vmem, size = 0x1000, scoped, tag = 'output window, operand 0, single buffered']
    %8 = vsyncpa [#allocation3], 0
    %9 = vsyncpa [#allocation6], 0
    %10 = vsyncpa [#allocation4], 0
    // Predicated region
    $region2: #{tpu_custom_call.1} parent=1 // pred_check
      _
    $region3: #{tpu_custom_call.1} parent=1 // pred_check_branch
      %12 = sbr.rel (0) target = $region5
    $region4: #{tpu_custom_call.1} parent=1 // pred_region
      %14 = vsyncadd [#allocation3], 0
      %s16 = sshll.u32 %s0, 4
      %s17 = int_to_ptr.hbm [resolvable:$true] %s16
      %s18 = sshll.u32 [#allocation2], 4
      %s19 = int_to_ptr.vmem [resolvable:$true] %s18
      %21 = dma.hbm_to_vmem [thread:$0]  %s17, 128, %s19, [#allocation3]
    $region5: #{tpu_custom_call.1} parent=1 // pred_fallthru
      _
    // Predicated region
    $region6: #{tpu_custom_call.1} parent=1 // pred_check
      _
    $region7: #{tpu_custom_call.1} parent=1 // pred_check_branch
      %23 = sbr.rel (0) target = $region9
    $region8: #{tpu_custom_call.1} parent=1 // pred_region
      %25 = vsyncadd [#allocation6], 0
      %s26 = sshll.u32 %s1, 4
      %s27 = int_to_ptr.hbm [resolvable:$true] %s26
      %s28 = sshll.u32 [#allocation5], 4
      %s29 = int_to_ptr.vmem [resolvable:$true] %s28
      %34 = dma.hbm_to_vmem [thread:$0]  %s27, 4096, %s29, [#allocation6], 64, 64, 4
    $region9: #{tpu_custom_call.1} parent=1 // pred_fallthru
      _
    // Predicated region
    $region10: #{tpu_custom_call.1} parent=1 // pred_check
      _
    $region11: #{tpu_custom_call.1} parent=1 // pred_check_branch
      %36 = sbr.rel (0) target = $region13
    $region12: #{tpu_custom_call.1} parent=1 // pred_region
      %38 = vsyncadd [#allocation6], 0
      %s39 = sshll.u32 %s2, 4
      %s40 = int_to_ptr.hbm [resolvable:$true] %s39
      %s41 = sshll.u32 [#allocation7], 4
      %s42 = int_to_ptr.vmem [resolvable:$true] %s41
      %47 = dma.hbm_to_vmem [thread:$0]  %s40, 64, %s42, [#allocation6], 16, 16, 1
    $region13: #{tpu_custom_call.1} parent=1 // pred_fallthru
      _
    // Predicated region
    $region14: #{tpu_custom_call.1} parent=1 // pred_check
      _
    $region15: #{tpu_custom_call.1} parent=1 // pred_check_branch
      %49 = sbr.rel (0) target = $region17
    $region16: #{tpu_custom_call.1} parent=1 // pred_region
      %51 = dma.done [#allocation3], 128
    $region17: #{tpu_custom_call.1} parent=1 // pred_fallthru
      _
    // Predicated region
    $region18: #{tpu_custom_call.1} parent=1 // pred_check
      _
    $region19: #{tpu_custom_call.1} parent=1 // pred_check_branch
      %53 = sbr.rel (0) target = $region21
    $region20: #{tpu_custom_call.1} parent=1 // pred_region
      %55 = dma.done [#allocation6], 4096
    $region21: #{tpu_custom_call.1} parent=1 // pred_fallthru
      _
    // Predicated region
    $region22: #{tpu_custom_call.1} parent=1 // pred_check
      _
    $region23: #{tpu_custom_call.1} parent=1 // pred_check_branch
      %57 = sbr.rel (0) target = $region25
    $region24: #{tpu_custom_call.1} parent=1 // pred_region
      %59 = dma.done [#allocation6], 64
    $region25: #{tpu_custom_call.1} parent=1 // pred_fallthru
      _
    %v60 = vld [vmem:[#allocation2] sm:$0xff]
    %v61 = vpack.c.bf16 %v60, %v60
    %v62 = vld [vmem:[#allocation5] sm:$0xf]
    %v63 = vld [vmem:[#allocation5 + $0x4] sm:$0xf]
    %v64 = vld [vmem:[#allocation5 + $0x8] sm:$0xf]
    %v65 = vld [vmem:[#allocation5 + $0xc] sm:$0xf]
    %v66 = vld [vmem:[#allocation5 + $0x10] sm:$0xf]
    %v67 = vld [vmem:[#allocation5 + $0x14] sm:$0xf]
    %v68 = vld [vmem:[#allocation5 + $0x18] sm:$0xf]
    %v69 = vld [vmem:[#allocation5 + $0x1c] sm:$0xf]
    %v70 = vld [vmem:[#allocation5 + $0x20] sm:$0xf]
    %v71 = vld [vmem:[#allocation5 + $0x24] sm:$0xf]
    %v72 = vld [vmem:[#allocation5 + $0x28] sm:$0xf]
    %v73 = vld [vmem:[#allocation5 + $0x2c] sm:$0xf]
    %v74 = vld [vmem:[#allocation5 + $0x30] sm:$0xf]
    %v75 = vld [vmem:[#allocation5 + $0x34] sm:$0xf]
    %v76 = vld [vmem:[#allocation5 + $0x38] sm:$0xf]
    %v77 = vld [vmem:[#allocation5 + $0x3c] sm:$0xf]
    %v78 = vld [vmem:[#allocation7] sm:$0x1]
    %v80 = vperm.slane %v78, 0
    %v98 = vunpack.c.l.b16 %v62
    %v99 = vunpack.c.l.b16 %v63
    %v100 = vunpack.c.l.b16 %v64
    %v101 = vunpack.c.l.b16 %v65
    %v102 = vunpack.c.l.b16 %v66
    %v103 = vunpack.c.l.b16 %v67
    %v104 = vunpack.c.l.b16 %v68
    %v105 = vunpack.c.l.b16 %v69
    %v106 = vunpack.c.l.b16 %v70
    %v107 = vunpack.c.l.b16 %v71
    %v108 = vunpack.c.l.b16 %v72
    %v109 = vunpack.c.l.b16 %v73
    %v110 = vunpack.c.l.b16 %v74
    %v111 = vunpack.c.l.b16 %v75
    %v112 = vunpack.c.l.b16 %v76
    %v113 = vunpack.c.l.b16 %v77
    %v114 = vpack.c.b16 %v99, %v98
    %v115 = vpack.c.b16 %v101, %v100
    %v116 = vpack.c.b16 %v103, %v102
    %v117 = vpack.c.b16 %v105, %v104
    %v118 = vpack.c.b16 %v107, %v106
    %v119 = vpack.c.b16 %v109, %v108
    %v120 = vpack.c.b16 %v111, %v110
    %v121 = vpack.c.b16 %v113, %v112
    %130 = vmatpush.bf16.msra.mxu0 %v121
    %131 = vmatpush.bf16.msra.mxu0 %v120
    %132 = vmatpush.bf16.msra.mxu0 %v119
    %133 = vmatpush.bf16.msra.mxu0 %v118
    %134 = vmatpush.bf16.msra.mxu0 %v117
    %135 = vmatpush.bf16.msra.mxu0 %v116
    %136 = vmatpush.bf16.msra.mxu0 %v115
    %137 = vmatpush.bf16.msra.mxu0 %v114
    %138 = vmatmul.bf16.gmra.mxu0 %v61
    %v139 = vpop.f32.mrf.mxu0
    %v140 = vadd.f32 %v80, %v139
    %v141 = vpop.f32.mrf.mxu0
    %142 = vdwg.mxu0
    %vm143 = vcmp.gt.f32.partialorder %v140, 0.0
    %v144 = vmul.f32 %v140, 0.01
    %v145 = vsel %vm143, %v140, %v144
    %v146 = vpack.c.bf16 %v145, %v145
    %s147 = scalar_lea.vmem [#allocation5], 64
    %v148 = vld [vmem:[%s147] sm:$0xf]
    %v149 = vld [vmem:[%s147 + $0x4] sm:$0xf]
    %v150 = vld [vmem:[%s147 + $0x8] sm:$0xf]
    %v151 = vld [vmem:[%s147 + $0xc] sm:$0xf]
    %v152 = vld [vmem:[%s147 + $0x10] sm:$0xf]
    %v153 = vld [vmem:[%s147 + $0x14] sm:$0xf]
    %v154 = vld [vmem:[%s147 + $0x18] sm:$0xf]
    %v155 = vld [vmem:[%s147 + $0x1c] sm:$0xf]
    %v156 = vld [vmem:[%s147 + $0x20] sm:$0xf]
    %v157 = vld [vmem:[%s147 + $0x24] sm:$0xf]
    %v158 = vld [vmem:[%s147 + $0x28] sm:$0xf]
    %v159 = vld [vmem:[%s147 + $0x2c] sm:$0xf]
    %v160 = vld [vmem:[%s147 + $0x30] sm:$0xf]
    %v161 = vld [vmem:[%s147 + $0x34] sm:$0xf]
    %v162 = vld [vmem:[%s147 + $0x38] sm:$0xf]
    %v163 = vld [vmem:[%s147 + $0x3c] sm:$0xf]
    %s164 = scalar_lea.vmem [#allocation7], 1
    %v165 = vld [vmem:[%s164] sm:$0x1]
    %v167 = vperm.slane %v165, 0
    %v185 = vunpack.c.l.b16 %v148
    %v186 = vunpack.c.l.b16 %v149
    %v187 = vunpack.c.l.b16 %v150
    %v188 = vunpack.c.l.b16 %v151
    %v189 = vunpack.c.l.b16 %v152
    %v190 = vunpack.c.l.b16 %v153
    %v191 = vunpack.c.l.b16 %v154
    %v192 = vunpack.c.l.b16 %v155
    %v193 = vunpack.c.l.b16 %v156
    %v194 = vunpack.c.l.b16 %v157
    %v195 = vunpack.c.l.b16 %v158
    %v196 = vunpack.c.l.b16 %v159
    %v197 = vunpack.c.l.b16 %v160
    %v198 = vunpack.c.l.b16 %v161
    %v199 = vunpack.c.l.b16 %v162
    %v200 = vunpack.c.l.b16 %v163
    %v201 = vpack.c.b16 %v186, %v185
    %v202 = vpack.c.b16 %v188, %v187
    %v203 = vpack.c.b16 %v190, %v189
    %v204 = vpack.c.b16 %v192, %v191
    %v205 = vpack.c.b16 %v194, %v193
    %v206 = vpack.c.b16 %v196, %v195
    %v207 = vpack.c.b16 %v198, %v197
    %v208 = vpack.c.b16 %v200, %v199
    %217 = vmatpush.bf16.msra.mxu0 %v208
    %218 = vmatpush.bf16.msra.mxu0 %v207
    %219 = vmatpush.bf16.msra.mxu0 %v206
    %220 = vmatpush.bf16.msra.mxu0 %v205
    %221 = vmatpush.bf16.msra.mxu0 %v204
    %222 = vmatpush.bf16.msra.mxu0 %v203
    %223 = vmatpush.bf16.msra.mxu0 %v202
    %224 = vmatpush.bf16.msra.mxu0 %v201
    %225 = vmatmul.bf16.gmra.mxu0 %v146
    %v226 = vpop.f32.mrf.mxu0
    %v227 = vadd.f32 %v167, %v226
    %v228 = vpop.f32.mrf.mxu0
    %229 = vdwg.mxu0
    %vm230 = vcmp.gt.f32.partialorder %v227, 0.0
    %v231 = vmul.f32 %v227, 0.01
    %v232 = vsel %vm230, %v227, %v231
    %v233 = vpack.c.bf16 %v232, %v232
    %s234 = scalar_lea.vmem [#allocation5], 128
    %v235 = vld [vmem:[%s234] sm:$0xf]
    %v236 = vld [vmem:[%s234 + $0x4] sm:$0xf]
    %v237 = vld [vmem:[%s234 + $0x8] sm:$0xf]
    %v238 = vld [vmem:[%s234 + $0xc] sm:$0xf]
    %v239 = vld [vmem:[%s234 + $0x10] sm:$0xf]
    %v240 = vld [vmem:[%s234 + $0x14] sm:$0xf]
    %v241 = vld [vmem:[%s234 + $0x18] sm:$0xf]
    %v242 = vld [vmem:[%s234 + $0x1c] sm:$0xf]
    %v243 = vld [vmem:[%s234 + $0x20] sm:$0xf]
    %v244 = vld [vmem:[%s234 + $0x24] sm:$0xf]
    %v245 = vld [vmem:[%s234 + $0x28] sm:$0xf]
    %v246 = vld [vmem:[%s234 + $0x2c] sm:$0xf]
    %v247 = vld [vmem:[%s234 + $0x30] sm:$0xf]
    %v248 = vld [vmem:[%s234 + $0x34] sm:$0xf]
    %v249 = vld [vmem:[%s234 + $0x38] sm:$0xf]
    %v250 = vld [vmem:[%s234 + $0x3c] sm:$0xf]
    %s251 = scalar_lea.vmem [#allocation7], 2
    %v252 = vld [vmem:[%s251] sm:$0x1]
    %v254 = vperm.slane %v252, 0
    %v272 = vunpack.c.l.b16 %v235
    %v273 = vunpack.c.l.b16 %v236
    %v274 = vunpack.c.l.b16 %v237
    %v275 = vunpack.c.l.b16 %v238
    %v276 = vunpack.c.l.b16 %v239
    %v277 = vunpack.c.l.b16 %v240
    %v278 = vunpack.c.l.b16 %v241
    %v279 = vunpack.c.l.b16 %v242
    %v280 = vunpack.c.l.b16 %v243
    %v281 = vunpack.c.l.b16 %v244
    %v282 = vunpack.c.l.b16 %v245
    %v283 = vunpack.c.l.b16 %v246
    %v284 = vunpack.c.l.b16 %v247
    %v285 = vunpack.c.l.b16 %v248
    %v286 = vunpack.c.l.b16 %v249
    %v287 = vunpack.c.l.b16 %v250
    %v288 = vpack.c.b16 %v273, %v272
    %v289 = vpack.c.b16 %v275, %v274
    %v290 = vpack.c.b16 %v277, %v276
    %v291 = vpack.c.b16 %v279, %v278
    %v292 = vpack.c.b16 %v281, %v280
    %v293 = vpack.c.b16 %v283, %v282
    %v294 = vpack.c.b16 %v285, %v284
    %v295 = vpack.c.b16 %v287, %v286
    %304 = vmatpush.bf16.msra.mxu0 %v295
    %305 = vmatpush.bf16.msra.mxu0 %v294
    %306 = vmatpush.bf16.msra.mxu0 %v293
    %307 = vmatpush.bf16.msra.mxu0 %v292
    %308 = vmatpush.bf16.msra.mxu0 %v291
    %309 = vmatpush.bf16.msra.mxu0 %v290
    %310 = vmatpush.bf16.msra.mxu0 %v289
    %311 = vmatpush.bf16.msra.mxu0 %v288
    %312 = vmatmul.bf16.gmra.mxu0 %v233
    %v313 = vpop.f32.mrf.mxu0
    %v314 = vadd.f32 %v254, %v313
    %v315 = vpop.f32.mrf.mxu0
    %316 = vdwg.mxu0
    %vm317 = vcmp.gt.f32.partialorder %v314, 0.0
    %v318 = vmul.f32 %v314, 0.01
    %v319 = vsel %vm317, %v314, %v318
    %v320 = vpack.c.bf16 %v319, %v319
    %s321 = scalar_lea.vmem [#allocation5], 192
    %v322 = vld [vmem:[%s321] sm:$0xf]
    %v323 = vld [vmem:[%s321 + $0x4] sm:$0xf]
    %v324 = vld [vmem:[%s321 + $0x8] sm:$0xf]
    %v325 = vld [vmem:[%s321 + $0xc] sm:$0xf]
    %v326 = vld [vmem:[%s321 + $0x10] sm:$0xf]
    %v327 = vld [vmem:[%s321 + $0x14] sm:$0xf]
    %v328 = vld [vmem:[%s321 + $0x18] sm:$0xf]
    %v329 = vld [vmem:[%s321 + $0x1c] sm:$0xf]
    %v330 = vld [vmem:[%s321 + $0x20] sm:$0xf]
    %v331 = vld [vmem:[%s321 + $0x24] sm:$0xf]
    %v332 = vld [vmem:[%s321 + $0x28] sm:$0xf]
    %v333 = vld [vmem:[%s321 + $0x2c] sm:$0xf]
    %v334 = vld [vmem:[%s321 + $0x30] sm:$0xf]
    %v335 = vld [vmem:[%s321 + $0x34] sm:$0xf]
    %v336 = vld [vmem:[%s321 + $0x38] sm:$0xf]
    %v337 = vld [vmem:[%s321 + $0x3c] sm:$0xf]
    %s338 = scalar_lea.vmem [#allocation7], 3
    %v339 = vld [vmem:[%s338] sm:$0x1]
    %v341 = vperm.slane %v339, 0
    %v359 = vunpack.c.l.b16 %v322
    %v360 = vunpack.c.l.b16 %v323
    %v361 = vunpack.c.l.b16 %v324
    %v362 = vunpack.c.l.b16 %v325
    %v363 = vunpack.c.l.b16 %v326
    %v364 = vunpack.c.l.b16 %v327
    %v365 = vunpack.c.l.b16 %v328
    %v366 = vunpack.c.l.b16 %v329
    %v367 = vunpack.c.l.b16 %v330
    %v368 = vunpack.c.l.b16 %v331
    %v369 = vunpack.c.l.b16 %v332
    %v370 = vunpack.c.l.b16 %v333
    %v371 = vunpack.c.l.b16 %v334
    %v372 = vunpack.c.l.b16 %v335
    %v373 = vunpack.c.l.b16 %v336
    %v374 = vunpack.c.l.b16 %v337
    %v375 = vpack.c.b16 %v360, %v359
    %v376 = vpack.c.b16 %v362, %v361
    %v377 = vpack.c.b16 %v364, %v363
    %v378 = vpack.c.b16 %v366, %v365
    %v379 = vpack.c.b16 %v368, %v367
    %v380 = vpack.c.b16 %v370, %v369
    %v381 = vpack.c.b16 %v372, %v371
    %v382 = vpack.c.b16 %v374, %v373
    %391 = vmatpush.bf16.msra.mxu0 %v382
    %392 = vmatpush.bf16.msra.mxu0 %v381
    %393 = vmatpush.bf16.msra.mxu0 %v380
    %394 = vmatpush.bf16.msra.mxu0 %v379
    %395 = vmatpush.bf16.msra.mxu0 %v378
    %396 = vmatpush.bf16.msra.mxu0 %v377
    %397 = vmatpush.bf16.msra.mxu0 %v376
    %398 = vmatpush.bf16.msra.mxu0 %v375
    %399 = vmatmul.bf16.gmra.mxu0 %v320
    %v400 = vpop.f32.mrf.mxu0
    %v401 = vadd.f32 %v341, %v400
    %v402 = vpop.f32.mrf.mxu0
    %403 = vdwg.mxu0
    %404 = vst [vmem:[#allocation8] sm:$0xff] %v401
    // Predicated region
    $region26: #{tpu_custom_call.1} parent=1 // pred_check
      _
    $region27: #{tpu_custom_call.1} parent=1 // pred_check_branch
      %406 = sbr.rel (0) target = $region29
    $region28: #{tpu_custom_call.1} parent=1 // pred_region
      %408 = vsyncadd [#allocation4], 0
      %s410 = sshll.u32 [#allocation8], 4
      %s411 = int_to_ptr.vmem [resolvable:$true] %s410
      %s412 = sshll.u32 %s3, 4
      %s413 = int_to_ptr.hbm [resolvable:$true] %s412
      %415 = dma.vmem_to_hbm [thread:$0]  %s411, 128, %s413, [#allocation4]
    $region29: #{tpu_custom_call.1} parent=1 // pred_fallthru
      _
    // Predicated region
    $region30: #{tpu_custom_call.1} parent=1 // pred_check
      _
    $region31: #{tpu_custom_call.1} parent=1 // pred_check_branch
      %417 = sbr.rel (0) target = $region33
    $region32: #{tpu_custom_call.1} parent=1 // pred_region
      %419 = dma.done [#allocation4], 128
    $region33: #{tpu_custom_call.1} parent=1 // pred_fallthru
      _
    %420 = vsyncpa [#allocation3], 1
    %421 = vsyncpa [#allocation6], 1
    %422 = vsyncpa [#allocation4], 1

</llo_original>
